<compile_context>
chip_gen: v7x
topology: tpu7x:2x2x1
jax: 0.10.0
libtpu: 0.0.40
codegen_flags: <defaults>
</compile_context>

<pallas_src>
import jax
import jax.numpy as jnp
from jax.experimental import pallas as pl
from jax.experimental.pallas import tpu as pltpu


_SOFTPLUS_GUARD = 20.0  # for x > 20, tanh(softplus(x)) == 1.0 exactly in float32


def _mish_kernel(x_ref, o_ref):
    x = x_ref[...].astype(jnp.float32)
    # tanh(softplus(x)) = tanh(log t) = (t^2 - 1) / (t^2 + 1), t = 1 + e^x.
    # Numerator written as e^x * (2 + e^x) (== t^2 - 1 exactly) to avoid
    # catastrophic cancellation for x << 0: y -> x * e^x instead of 0.
    xs = jnp.minimum(x, _SOFTPLUS_GUARD)        # keep exp finite
    e = jnp.exp(xs)                             # single EUP transcendental
    num = e * (2.0 + e)                         # t^2 - 1
    den = num + 2.0                             # t^2 + 1
    y = x * num / den
    y = jnp.where(x > _SOFTPLUS_GUARD, x, y)    # exact saturated tail: mish(x) -> x
    o_ref[...] = y.astype(o_ref.dtype)


_SUBLANE_MULT = 32                  # satisfies f32 (8) / bf16 (16) / int8-fp8 (32) packing
_LANE_CANDIDATES = (4096, 2048, 1024, 512, 256, 128)
_SMALL_TENSOR_BYTES = 1 << 20       # <= 1 MiB: single block; pipelining can't pay for itself
_MIN_GRID_STEPS = 4                 # keep DMA-in / compute / DMA-out overlapped
_FALLBACK_VMEM_BYTES = 64 << 20     # smallest current-gen VMEM (v7x per TensorCore)


def _round_up(n, m):
    return (n + m - 1) // m * m


def _vmem_capacity_bytes():
    try:
        return int(pltpu.get_tpu_info().vmem_capacity_bytes)
    except Exception:
        return _FALLBACK_VMEM_BYTES


def _choose_lanes(n_elem):
    """Widest lane width that divides n_elem exactly (None if ragged)."""
    for lanes in _LANE_CANDIDATES:
        if n_elem % lanes == 0:
            return lanes
    return None


def _mish_jnp(x):
    """Plain-JAX mish for tiny ragged tails (< 128 elements)."""
    x32 = x.astype(jnp.float32)
    return (x32 * jnp.tanh(jax.nn.softplus(x32))).astype(x.dtype)


def _mish_pallas_2d(x_flat, n_elem, lanes, dtype):
    """Run the kernel on a flat, lanes-divisible array; returns a flat result."""
    rows = n_elem // lanes
    x2d = x_flat.reshape(rows, lanes)
    itemsize = jnp.dtype(dtype).itemsize
    row_bytes = lanes * itemsize
    total_bytes = rows * row_bytes

    # Generation-aware block budget: ~8 MiB blocks on 128 MiB-VMEM parts
    # (v5e/v6e), capped at vmem/8 so 4 double-buffered blocks fit v7x's 64 MiB.
    vmem_cap = _vmem_capacity_bytes()
    target_block_bytes = min(8 << 20, vmem_cap // 8)
    max_rows = max(
        _SUBLANE_MULT,
        (target_block_bytes // row_bytes) // _SUBLANE_MULT * _SUBLANE_MULT,
    )

    if total_bytes <= _SMALL_TENSOR_BYTES or rows <= _SUBLANE_MULT:
        # Tiny tensor: per-step overhead dominates; one block equal to the
        # full array dims (always a legal block shape).
        tile_rows = rows
    else:
        # At least _MIN_GRID_STEPS blocks so in-DMA / compute / out-DMA overlap
        # and both v7x TensorCores get work; capped by the VMEM block budget.
        tile_rows = min(max_rows,
                        _round_up(pl.cdiv(rows, _MIN_GRID_STEPS), _SUBLANE_MULT))
        tile_rows = min(tile_rows, rows)
        # Best-effort: even number of grid steps so 2 TensorCores split evenly.
        steps = pl.cdiv(rows, tile_rows)
        if steps > 1 and steps % 2 == 1:
            alt = _round_up(pl.cdiv(rows, steps + 1), _SUBLANE_MULT)
            if alt >= _SUBLANE_MULT and pl.cdiv(rows, alt) % 2 == 0:
                tile_rows = alt

    grid = (pl.cdiv(rows, tile_rows),)  # partial last block masked by Pallas
    block_bytes = tile_rows * row_bytes
    # 2 input + 2 output double-buffers plus compiler headroom, clamped well
    # below physical VMEM on every generation.
    vmem_limit = min(vmem_cap * 3 // 4,
                     max(4 * block_bytes + (16 << 20), 32 << 20))

    out2d = pl.pallas_call(
        _mish_kernel,
        out_shape=jax.ShapeDtypeStruct((rows, lanes), dtype),
        grid_spec=pltpu.PrefetchScalarGridSpec(
            num_scalar_prefetch=0,
            grid=grid,
            in_specs=[pl.BlockSpec((tile_rows, lanes), lambda i: (i, 0))],
            out_specs=pl.BlockSpec((tile_rows, lanes), lambda i: (i, 0)),
        ),
        compiler_params=pltpu.CompilerParams(
            dimension_semantics=("parallel",),   # shardable across v7x's 2 TCs
            vmem_limit_bytes=int(vmem_limit),
        ),
    )(x2d)
    return out2d.reshape(-1)


def mish(x: jax.Array) -> jax.Array:
    """Mish activation (x * tanh(softplus(x))). Elementwise, any shape/dtype."""
    orig_shape = x.shape
    dtype = x.dtype
    n = x.size
    if n == 0:
        return x

    x_flat = jnp.ravel(x)
    lanes = _choose_lanes(n)
    if lanes is not None:
        out_flat = _mish_pallas_2d(x_flat, n, lanes, dtype)
    else:
        # Ragged size: kernel on the 128-divisible prefix, tiny jnp tail.
        # No full-tensor pad / output slice (each of those was a full HBM pass).
        n_main = (n // 128) * 128
        if n_main == 0:
            out_flat = _mish_jnp(x_flat)
        else:
            main_lanes = _choose_lanes(n_main)
            main = _mish_pallas_2d(x_flat[:n_main], n_main, main_lanes, dtype)
            tail = _mish_jnp(x_flat[n_main:])
            # TODO(synk): the concatenate still costs one assembly pass in the
            # ragged fallback; true zero-copy would need a masked in-kernel tail.
            out_flat = jnp.concatenate([main, tail])
    return out_flat.reshape(orig_shape)


def _mish_ref(x):
    x32 = x.astype(jnp.float32)
    return (x32 * jnp.tanh(jax.nn.softplus(x32))).astype(x.dtype)


if __name__ == "__main__":
    key = jax.random.PRNGKey(0)

    # Small NCHW input consistent with a conv-activation module.
    x = jax.random.normal(key, (2, 4, 16, 16), dtype=jnp.float32) * 3.0
    y = jax.block_until_ready(mish(x))
    assert y.shape == x.shape and y.dtype == x.dtype
    assert jnp.allclose(y, _mish_ref(x), atol=1e-4, rtol=1e-4), "f32 mismatch vs reference"

    # Larger NCHW input: exercises the multi-block (pipelined, >=4-step) path.
    x_big = jax.random.normal(jax.random.PRNGKey(3), (8, 16, 64, 64), dtype=jnp.float32) * 3.0
    y_big = jax.block_until_ready(mish(x_big))
    assert jnp.allclose(y_big, _mish_ref(x_big), atol=1e-4, rtol=1e-4), \
        "tiled f32 mismatch vs reference"

    # Ragged size (exercises the no-pad prefix + jnp-tail fallback path).
    x_ragged = jax.random.normal(jax.random.PRNGKey(1), (3, 5, 7), dtype=jnp.float32) * 3.0
    y_ragged = jax.block_until_ready(mish(x_ragged))
    assert jnp.allclose(y_ragged, _mish_ref(x_ragged), atol=1e-4, rtol=1e-4), \
        "ragged f32 mismatch vs reference"

    # bf16 activations (dtype-aware tiling, internal f32 compute).
    x_bf16 = (jax.random.normal(jax.random.PRNGKey(2), (2, 4, 16, 16), dtype=jnp.float32)
              * 3.0).astype(jnp.bfloat16)
    y_bf16 = jax.block_until_ready(mish(x_bf16))
    assert y_bf16.shape == x_bf16.shape and y_bf16.dtype == jnp.bfloat16
    assert jnp.allclose(y_bf16.astype(jnp.float32),
                        _mish_ref(x_bf16).astype(jnp.float32),
                        atol=2e-2, rtol=2e-2), "bf16 mismatch vs reference"

    # Extreme values inside a lane-aligned tensor (negative-tail accuracy fix).
    x_ext = jnp.zeros((8, 128), jnp.float32)
    x_ext = x_ext.at[0, :7].set(jnp.array([-40.0, -20.0, -1.0, 0.0, 1.0, 20.0, 40.0]))
    y_ext = jax.block_until_ready(mish(x_ext))
    assert jnp.allclose(y_ext, _mish_ref(x_ext), atol=1e-6, rtol=1e-4), \
        "extreme-value mismatch vs reference"

    print("KERNEL_OK")
</pallas_src>

<mosaic_0001>
module attributes {stable_mosaic.version = 11 : i64} {
  func.func @_mish_kernel(%arg0: i32, %arg1: memref<1x2048xf32, #tpu.memory_space<vmem>>, %arg2: memref<1x2048xf32, #tpu.memory_space<vmem>>) attributes {dimension_semantics = [#tpu.dimension_semantics<parallel>], iteration_bounds = array<i64: 1>, scalar_prefetch = 0 : i64, scratch_operands = 0 : i64, tpu.core_type = #tpu.core_type<tc>, window_params = [{transform_indices = @transform_0, window_bounds = array<i64: 1, 2048>}, {transform_indices = @transform_1, window_bounds = array<i64: 1, 2048>}]} {
    %c0 = arith.constant 0 : index
    %c0_0 = arith.constant 0 : index
    %0 = vector.load %arg1[%c0, %c0_0] : memref<1x2048xf32, #tpu.memory_space<vmem>>, vector<1x2048xf32>
    %cst = arith.constant 2.000000e+01 : f32
    %1 = vector.broadcast %cst : f32 to vector<1x2048xf32>
    %2 = arith.minimumf %0, %1 : vector<1x2048xf32>
    %3 = math.exp %2 : vector<1x2048xf32>
    %cst_1 = arith.constant 2.000000e+00 : f32
    %4 = vector.broadcast %cst_1 : f32 to vector<1x2048xf32>
    %5 = arith.addf %4, %3 : vector<1x2048xf32>
    %6 = arith.mulf %3, %5 : vector<1x2048xf32>
    %cst_2 = arith.constant 2.000000e+00 : f32
    %7 = vector.broadcast %cst_2 : f32 to vector<1x2048xf32>
    %8 = arith.addf %6, %7 : vector<1x2048xf32>
    %9 = arith.mulf %0, %6 : vector<1x2048xf32>
    %10 = arith.divf %9, %8 : vector<1x2048xf32>
    %cst_3 = arith.constant 2.000000e+01 : f32
    %11 = vector.broadcast %cst_3 : f32 to vector<1x2048xf32>
    %12 = arith.cmpf ogt, %0, %11 : vector<1x2048xf32>
    %13 = arith.select %12, %0, %10 : vector<1x2048xi1>, vector<1x2048xf32>
    %c0_4 = arith.constant 0 : index
    %c0_5 = arith.constant 0 : index
    %14 = vector.load %arg2[%c0_4, %c0_5] : memref<1x2048xf32, #tpu.memory_space<vmem>>, vector<1x2048xf32>
    tpu.vector_store %arg2[%c0_4, %c0_5], %13 {strides = array<i32>} : memref<1x2048xf32, #tpu.memory_space<vmem>>, vector<1x2048xf32>,
    return
  }
  func.func @transform_0(%arg0: i32) -> (i32, i32) {
    %c0_i32 = arith.constant 0 : i32
    %c0_i32_0 = arith.constant 0 : i32
    return %arg0, %c0_i32 : i32, i32
  }
  func.func @transform_1(%arg0: i32) -> (i32, i32) {
    %c0_i32 = arith.constant 0 : i32
    %c0_i32_0 = arith.constant 0 : i32
    return %arg0, %c0_i32 : i32, i32
  }
}

</mosaic_0001>

<llo_original>
// kernel: tpu_custom_call.1
$region0: #{tpu_custom_call.1}
  #allocation0 [shape = 'u32[]', space=smem, size = 0x4, offset = 0x4, fixed_abs, tag = 'smem constant byte address 0x4 - core index']
  #allocation1 [shape = 'u32[144,128]{1,0:T(1,128)}', space=vmem, size = 0x12000, scoped, tag = 'internal scratch']
  %s0 = inlined_call_operand.hbm [shape: f32[1,2048], index: 0, kind: input, shape index: {}]
  %s1 = inlined_call_operand.hbm [shape: f32[1,2048], index: 1, kind: output, shape index: {}]
  %s2 = sld [smem:[#allocation0]]
  $region18: #{tpu_custom_call.1} parent=0
    _
  %s4 = ssub.s32 1, %s2
  %s5 = scalar_select 0, %s4, %s2
  $region1: #{tpu_custom_call.1} parent=0
    #allocation2 [shape = 'u8[8192]{0}', space=vmem, size = 0x2000, scoped, tag = 'input window, operand 0, single buffered']
    #allocation3 [shape = 's32[1]{0}', space=sflag, size = 0x4, scoped, tag = 'scoped memory for tpu_custom_call.1']
    #allocation4 [shape = 's32[1]{0}', space=sflag, size = 0x4, scoped, tag = 'scoped memory for tpu_custom_call.1']
    #allocation5 [shape = 'u8[8192]{0}', space=vmem, size = 0x2000, scoped, tag = 'output window, operand 0, single buffered']
    %6 = vsyncpa [#allocation3], 0
    %7 = vsyncpa [#allocation4], 0
    // Predicated region
    $region2: #{tpu_custom_call.1} parent=1 // pred_check
      _
    $region3: #{tpu_custom_call.1} parent=1 // pred_check_branch
      %9 = sbr.rel (0) target = $region5
    $region4: #{tpu_custom_call.1} parent=1 // pred_region
      %s11 = ssub.s32 256, 256
      %12 = vsyncadd [#allocation3], %s11
      %s14 = sshll.u32 [#allocation2], 4
      %s15 = int_to_ptr.vmem [resolvable:$true] %s14
      %17 = dma.hbm_to_vmem [thread:$0]  %s0, 256, %s15, [#allocation3]
    $region5: #{tpu_custom_call.1} parent=1 // pred_fallthru
      _
    // Predicated region
    $region6: #{tpu_custom_call.1} parent=1 // pred_check
      _
    $region7: #{tpu_custom_call.1} parent=1 // pred_check_branch
      %19 = sbr.rel (0) target = $region9
    $region8: #{tpu_custom_call.1} parent=1 // pred_region
      %20 = dma.done [#allocation3], 256
    $region9: #{tpu_custom_call.1} parent=1 // pred_fallthru
      _
    %v21 = vld [vmem:[#allocation2] sm:$0xff]
    %v22 = vld [vmem:[#allocation2 + $0x8] sm:$0xff]
    %v23 = vmin.f32 %v21, 20.0
    %v24 = vmin.f32 %v22, 20.0
    %v25 = vmul.f32 %v23, 1.442695
    %v26 = vpow.pop %v25
    %v27 = vmul.f32 %v24, 1.442695
    %v28 = vpow.pop %v27
    %v29 = vadd.f32 %v26, 2.0
    %v30 = vadd.f32 %v28, 2.0
    %v31 = vmul.f32 %v26, %v29
    %v32 = vmul.f32 %v28, %v30
    %v33 = vadd.f32 %v31, 2.0
    %v34 = vadd.f32 %v32, 2.0
    %v35 = vmul.f32 %v21, %v31
    %v36 = vmul.f32 %v22, %v32
    %v37 = vrcp.pop %v33
    %v38 = vmul.f32 %v35, %v37
    %v39 = vrcp.pop %v34
    %v40 = vmul.f32 %v36, %v39
    %vm41 = vcmp.gt.f32.partialorder %v21, 20.0
    %vm42 = vcmp.gt.f32.partialorder %v22, 20.0
    %v43 = vsel %vm41, %v21, %v38
    %v44 = vsel %vm42, %v22, %v40
    %45 = vst [vmem:[#allocation5] sm:$0xff] %v43
    %46 = vst [vmem:[#allocation5 + $0x8] sm:$0xff] %v44
    // Predicated region
    $region10: #{tpu_custom_call.1} parent=1 // pred_check
      _
    $region11: #{tpu_custom_call.1} parent=1 // pred_check_branch
      %48 = sbr.rel (0) target = $region13
    $region12: #{tpu_custom_call.1} parent=1 // pred_region
      %s50 = ssub.s32 256, 256
      %51 = vsyncadd [#allocation4], %s50
      %s53 = sshll.u32 [#allocation5], 4
      %s54 = int_to_ptr.vmem [resolvable:$true] %s53
      %56 = dma.vmem_to_hbm [thread:$0]  %s54, 256, %s1, [#allocation4]
    $region13: #{tpu_custom_call.1} parent=1 // pred_fallthru
      _
    // Predicated region
    $region14: #{tpu_custom_call.1} parent=1 // pred_check
      _
    $region15: #{tpu_custom_call.1} parent=1 // pred_check_branch
      %58 = sbr.rel (0) target = $region17
    $region16: #{tpu_custom_call.1} parent=1 // pred_region
      %59 = dma.done [#allocation4], 256
    $region17: #{tpu_custom_call.1} parent=1 // pred_fallthru
      _
    %60 = vsyncpa [#allocation3], 1
    %61 = vsyncpa [#allocation4], 1

</llo_original>
